<compile_context>
chip_gen: v6e
topology: v6e:2x2x1
jax: 0.10.0
libtpu: 0.0.40
codegen_flags: <defaults>
</compile_context>

<pallas_src>
import functools

import jax
import jax.numpy as jnp
from jax.experimental import pallas as pl
from jax.experimental.pallas import tpu as pltpu

X_DIM = 102              # adult
U_DIM = 1
IN_DIM = X_DIM + U_DIM   # mifr=True -> encoder in_dim = 103
HID = 50
Z_DIM = 10
ZU = Z_DIM + U_DIM       # 11 lanes: [z | u]
OUT_DIM = 102            # adult decoder out_dim


def _round_up(n, m):
    return ((n + m - 1) // m) * m


def _vae_kernel(
    xu_ref, epsu_ref,
    w1_ref, b1_ref, wh_ref, bh_ref,
    wd1_ref, bd1_ref, wd2_ref, bd2_ref,
    recon_ref, stats_ref, zu_ref,
):
    """One batch tile. MXU operands bf16 (f32 accumulation); VPU/EUP math f32."""
    xu = xu_ref[...]                                    # [TB, IN_DIM] bf16
    eps_u = epsu_ref[...].astype(jnp.float32)           # [TB, ZU] = [eps | u]

    # ---- Encoder layer 1 ----
    h = jax.nn.softplus(
        jnp.dot(xu, w1_ref[...], preferred_element_type=jnp.float32) + b1_ref[...]
    )                                                   # [TB, HID] f32

    # ---- Fused stats head: [means | 0 | log_var | 0] ----
    # (zero columns let u ride through the reparameterization untouched)
    stats = jnp.dot(h.astype(jnp.bfloat16), wh_ref[...],
                    preferred_element_type=jnp.float32) + bh_ref[...]   # [TB, 2*ZU]
    means_ext = stats[:, :ZU]                           # [means | 0]
    logv_ext = stats[:, ZU:]                            # [log_var | 0]

    # ---- Reparameterization with u folded in:
    #      [eps|u]*exp(0.5*[log_var|0]) + [means|0]  ==  [eps*std+means | u] ----
    zu = eps_u * jnp.exp(0.5 * logv_ext) + means_ext    # [TB, ZU] f32

    # ---- Decoder (u already sits at lane Z_DIM of zu -> plain K=11 matmul) ----
    hd = jax.nn.softplus(
        jnp.dot(zu.astype(jnp.bfloat16), wd1_ref[...],
                preferred_element_type=jnp.float32) + bd1_ref[...]
    )                                                   # [TB, HID] f32
    t = jnp.dot(hd.astype(jnp.bfloat16), wd2_ref[...],
                preferred_element_type=jnp.float32) + bd2_ref[...]
    recon = 0.5 * jnp.tanh(0.5 * t) + 0.5               # sigmoid via one EUP tanh

    # Three lane-offset-0 output slabs: no rotates, no split masked stores.
    recon_ref[...] = recon
    stats_ref[...] = stats
    zu_ref[...] = zu


@functools.partial(jax.jit, static_argnames=("block_b",))
def vae_forward(x, u, eps, params, *, block_b=4096):
    """VAE forward pass in a single batch-gridded Pallas kernel.

    x: [B, X_DIM]   u: [B, 1]   eps: [B, Z_DIM]
    Returns (recon_x, means, log_var, z).
    """
    B = x.shape[0]
    (w1, b1, wm, bm, wv, bv, wd1, bd1, wd2, bd2) = params

    # --- one-time wrapper-side packing ---
    zcol = jnp.zeros((HID, 1), jnp.float32)
    wh = jnp.concatenate([wm, zcol, wv, zcol], axis=1)       # [HID, 2*ZU]
    zb = jnp.zeros((1, 1), jnp.float32)
    bh = jnp.concatenate([bm, zb, bv, zb], axis=1)           # [1, 2*ZU]

    # bf16 MXU-operand weights; biases stay f32 (added after f32 accumulation).
    w1_b = w1.astype(jnp.bfloat16)
    wh_b = wh.astype(jnp.bfloat16)
    wd1_b = wd1.astype(jnp.bfloat16)
    wd2_b = wd2.astype(jnp.bfloat16)

    # bf16 activation streams: halves the dominant HBM read traffic.
    xu = jnp.concatenate([x, u], axis=1).astype(jnp.bfloat16)       # [B, IN_DIM]
    eps_u = jnp.concatenate([eps, u], axis=1).astype(jnp.bfloat16)  # [B, ZU]

    # --- batch tiling ---
    # Rows per grid step: multiple of 16 (bf16 sublane packing), capped both by
    # block_b and by ceil(B/2) so large batches always give >= 2 grid steps
    # (keeps both v7x TensorCores busy under dimension_semantics="parallel").
    # VMEM math at the default block_b=4096 (f32 outputs, bf16 inputs):
    #   2 buffers * (xu ~0.8 MiB + eps_u ~0.09 MiB + outs ~2.2 MiB) ~= 6 MiB,
    # far under the 32 MiB default scoped VMEM on v5e/v6e/v7x.
    tb = min(block_b, max(16, _round_up(-(-B // 2), 16)))
    b_pad = _round_up(B, tb)
    if b_pad != B:
        pad = b_pad - B
        xu = jnp.pad(xu, ((0, pad), (0, 0)))
        eps_u = jnp.pad(eps_u, ((0, pad), (0, 0)))
    grid = (b_pad // tb,)

    def row_spec(d):
        return pl.BlockSpec((tb, d), lambda i: (i, 0))

    def full_spec(a):
        # Constant index_map: the tiny weights (~60 KiB bf16 total) are DMA'd
        # once and stay VMEM-resident across grid steps.
        return pl.BlockSpec(a.shape, lambda i: (0, 0))

    w_bytes = (2 * sum(int(a.size) for a in (w1_b, wh_b, wd1_b, wd2_b))
               + 4 * sum(int(a.size) for a in (b1, bh, bd1, bd2)))
    # Note: logical (unpadded) FLOPs; real MXU work is higher due to K/N padding.
    cost = pl.CostEstimate(
        flops=2 * b_pad * (IN_DIM * HID + HID * 2 * ZU + ZU * HID + HID * OUT_DIM),
        transcendentals=b_pad * (4 * HID + ZU + OUT_DIM),
        bytes_accessed=(2 * b_pad * (IN_DIM + ZU)
                        + 4 * b_pad * (OUT_DIM + 3 * ZU)
                        + w_bytes),
    )

    recon, stats, zu = pl.pallas_call(
        _vae_kernel,
        out_shape=(
            jax.ShapeDtypeStruct((b_pad, OUT_DIM), jnp.float32),
            jax.ShapeDtypeStruct((b_pad, 2 * ZU), jnp.float32),
            jax.ShapeDtypeStruct((b_pad, ZU), jnp.float32),
        ),
        grid=grid,
        in_specs=[
            row_spec(IN_DIM),            # xu stream (bf16)
            row_spec(ZU),                # [eps | u] stream (bf16)
            full_spec(w1_b), full_spec(b1),
            full_spec(wh_b), full_spec(bh),
            full_spec(wd1_b), full_spec(bd1),
            full_spec(wd2_b), full_spec(bd2),
        ],
        out_specs=(row_spec(OUT_DIM), row_spec(2 * ZU), row_spec(ZU)),
        compiler_params=pltpu.CompilerParams(
            dimension_semantics=("parallel",),
        ),
        cost_estimate=cost,
    )(xu, eps_u, w1_b, b1, wh_b, bh, wd1_b, bd1, wd2_b, bd2)

    recon = recon[:B]
    means = stats[:B, :Z_DIM]
    log_var = stats[:B, ZU:ZU + Z_DIM]
    z = zu[:B, :Z_DIM]
    return recon, means, log_var, z


def vae_reference(x, u, eps, params):
    """Pure-JAX f32 reference of the same math."""
    w1, b1, wm, bm, wv, bv, wd1, bd1, wd2, bd2 = params
    xu = jnp.concatenate([x, u], axis=1)
    h = jax.nn.softplus(xu @ w1 + b1)
    means = h @ wm + bm
    log_var = h @ wv + bv
    z = eps * jnp.exp(0.5 * log_var) + means
    hd = jax.nn.softplus(jnp.concatenate([z, u], axis=1) @ wd1 + bd1)
    recon = jax.nn.sigmoid(hd @ wd2 + bd2)
    return recon, means, log_var, z


def init_params(key):
    """Deterministic parameter init (PyTorch-Linear-style uniform, synthetic)."""
    def linear(k, fan_in, fan_out):
        k1, k2 = jax.random.split(k)
        bound = 1.0 / jnp.sqrt(fan_in)
        w = jax.random.uniform(k1, (fan_in, fan_out), jnp.float32, -bound, bound)
        b = jax.random.uniform(k2, (1, fan_out), jnp.float32, -bound, bound)
        return w, b

    ks = jax.random.split(key, 5)
    w1, b1 = linear(ks[0], IN_DIM, HID)               # encoder MLP
    wm, bm = linear(ks[1], HID, Z_DIM)                # linear_means
    wv, bv = linear(ks[2], HID, Z_DIM)                # linear_log_var
    wd1, bd1 = linear(ks[3], Z_DIM + U_DIM, HID)      # decoder layer 1
    wd2, bd2 = linear(ks[4], HID, OUT_DIM)            # decoder layer 2
    return (w1, b1, wm, bm, wv, bv, wd1, bd1, wd2, bd2)


def _check(B, key, params, block_b, atol):
    k_x, k_u, k_eps = jax.random.split(key, 3)
    x = jax.random.normal(k_x, (B, X_DIM), jnp.float32)
    u = (jax.random.uniform(k_u, (B, U_DIM)) > 0.5).astype(jnp.float32)
    eps = jax.random.normal(k_eps, (B, Z_DIM), jnp.float32)

    outs = vae_forward(x, u, eps, params, block_b=block_b)
    jax.block_until_ready(outs)
    refs = vae_reference(x, u, eps, params)
    for o, r in zip(outs, refs):
        assert o.shape == r.shape, (o.shape, r.shape)
        # bf16 MXU operands -> tolerance loosened vs the old f32-only 1e-5.
        assert jnp.allclose(o, r, atol=atol), float(jnp.max(jnp.abs(o - r)))


if __name__ == "__main__":
    key = jax.random.PRNGKey(0)
    k_param, k_small, k_big = jax.random.split(key, 3)
    params = init_params(k_param)

    # Small batch (single grid step).
    _check(B=8, key=k_small, params=params, block_b=4096, atol=6e-2)
    # Larger, non-multiple batch: exercises padding + multi-step pipelined grid.
    _check(B=300, key=k_big, params=params, block_b=128, atol=6e-2)

    print("KERNEL_OK")
</pallas_src>

<mosaic_0001>
module attributes {stable_mosaic.version = 11 : i64} {
  func.func @_vae_kernel(%arg0: i32, %arg1: memref<16x103xbf16, #tpu.memory_space<vmem>>, %arg2: memref<16x11xbf16, #tpu.memory_space<vmem>>, %arg3: memref<103x50xbf16, #tpu.memory_space<vmem>>, %arg4: memref<1x50xf32, #tpu.memory_space<vmem>>, %arg5: memref<50x22xbf16, #tpu.memory_space<vmem>>, %arg6: memref<1x22xf32, #tpu.memory_space<vmem>>, %arg7: memref<11x50xbf16, #tpu.memory_space<vmem>>, %arg8: memref<1x50xf32, #tpu.memory_space<vmem>>, %arg9: memref<50x102xbf16, #tpu.memory_space<vmem>>, %arg10: memref<1x102xf32, #tpu.memory_space<vmem>>, %arg11: memref<16x102xf32, #tpu.memory_space<vmem>>, %arg12: memref<16x22xf32, #tpu.memory_space<vmem>>, %arg13: memref<16x11xf32, #tpu.memory_space<vmem>>) attributes {dimension_semantics = [#tpu.dimension_semantics<parallel>], iteration_bounds = array<i64: 1>, scalar_prefetch = 0 : i64, scratch_operands = 0 : i64, tpu.core_type = #tpu.core_type<tc>, window_params = [{transform_indices = @transform_0, window_bounds = array<i64: 16, 103>}, {transform_indices = @transform_1, window_bounds = array<i64: 16, 11>}, {pipeline_mode = #tpu.pipeline_mode<synchronous>, transform_indices = @transform_2, window_bounds = array<i64: 103, 50>}, {pipeline_mode = #tpu.pipeline_mode<synchronous>, transform_indices = @transform_3, window_bounds = array<i64: 1, 50>}, {pipeline_mode = #tpu.pipeline_mode<synchronous>, transform_indices = @transform_4, window_bounds = array<i64: 50, 22>}, {pipeline_mode = #tpu.pipeline_mode<synchronous>, transform_indices = @transform_5, window_bounds = array<i64: 1, 22>}, {pipeline_mode = #tpu.pipeline_mode<synchronous>, transform_indices = @transform_6, window_bounds = array<i64: 11, 50>}, {pipeline_mode = #tpu.pipeline_mode<synchronous>, transform_indices = @transform_7, window_bounds = array<i64: 1, 50>}, {pipeline_mode = #tpu.pipeline_mode<synchronous>, transform_indices = @transform_8, window_bounds = array<i64: 50, 102>}, {pipeline_mode = #tpu.pipeline_mode<synchronous>, transform_indices = @transform_9, window_bounds = array<i64: 1, 102>}, {transform_indices = @transform_10, window_bounds = array<i64: 16, 102>}, {transform_indices = @transform_11, window_bounds = array<i64: 16, 22>}, {transform_indices = @transform_12, window_bounds = array<i64: 16, 11>}]} {
    %c0 = arith.constant 0 : index
    %c0_0 = arith.constant 0 : index
    %0 = vector.load %arg1[%c0, %c0_0] : memref<16x103xbf16, #tpu.memory_space<vmem>>, vector<16x103xbf16>
    %c0_1 = arith.constant 0 : index
    %c0_2 = arith.constant 0 : index
    %1 = vector.load %arg2[%c0_1, %c0_2] : memref<16x11xbf16, #tpu.memory_space<vmem>>, vector<16x11xbf16>
    %2 = arith.extf %1 : vector<16x11xbf16> to vector<16x11xf32>
    %c0_3 = arith.constant 0 : index
    %c0_4 = arith.constant 0 : index
    %3 = vector.load %arg3[%c0_3, %c0_4] : memref<103x50xbf16, #tpu.memory_space<vmem>>, vector<103x50xbf16>
    %cst = arith.constant dense<0.000000e+00> : vector<16x50xf32>
    %4 = tpu.matmul %0, %3, %cst {dimension_numbers = #tpu.dot_dimension_numbers<[1], [0], [0], [1], [0, 0, 1, 1], [], []>} : vector<16x103xbf16>, vector<103x50xbf16>, vector<16x50xf32> -> vector<16x50xf32>
    %c0_5 = arith.constant 0 : index
    %c0_6 = arith.constant 0 : index
    %5 = vector.load %arg4[%c0_5, %c0_6] : memref<1x50xf32, #tpu.memory_space<vmem>>, vector<1x50xf32>
    %6 = vector.broadcast %5 : vector<1x50xf32> to vector<16x50xf32>
    %7 = arith.addf %4, %6 : vector<16x50xf32>
    %cst_7 = arith.constant 0.000000e+00 : f32
    %8 = vector.broadcast %cst_7 : f32 to vector<16x50xf32>
    %9 = arith.maximumf %7, %8 : vector<16x50xf32>
    %10 = vector.broadcast %cst_7 : f32 to vector<16x50xf32>
    %11 = arith.subf %7, %10 : vector<16x50xf32>
    %12 = arith.cmpf one, %11, %11 : vector<16x50xf32>
    %13 = vector.broadcast %cst_7 : f32 to vector<16x50xf32>
    %14 = arith.addf %7, %13 : vector<16x50xf32>
    %15 = math.absf %11 : vector<16x50xf32>
    %cst_8 = arith.constant 0.000000e+00 : f32
    %16 = vector.broadcast %cst_8 : f32 to vector<16x50xf32>
    %17 = arith.subf %16, %15 : vector<16x50xf32>
    %18 = math.exp %17 : vector<16x50xf32>
    %19 = math.log1p %18 : vector<16x50xf32>
    %20 = arith.addf %9, %19 : vector<16x50xf32>
    %21 = arith.select %12, %14, %20 : vector<16x50xi1>, vector<16x50xf32>
    %22 = arith.truncf %21 : vector<16x50xf32> to vector<16x50xbf16>
    %c0_9 = arith.constant 0 : index
    %c0_10 = arith.constant 0 : index
    %23 = vector.load %arg5[%c0_9, %c0_10] : memref<50x22xbf16, #tpu.memory_space<vmem>>, vector<50x22xbf16>
    %cst_11 = arith.constant dense<0.000000e+00> : vector<16x22xf32>
    %24 = tpu.matmul %22, %23, %cst_11 {dimension_numbers = #tpu.dot_dimension_numbers<[1], [0], [0], [1], [0, 0, 1, 1], [], []>} : vector<16x50xbf16>, vector<50x22xbf16>, vector<16x22xf32> -> vector<16x22xf32>
    %c0_12 = arith.constant 0 : index
    %c0_13 = arith.constant 0 : index
    %25 = vector.load %arg6[%c0_12, %c0_13] : memref<1x22xf32, #tpu.memory_space<vmem>>, vector<1x22xf32>
    %26 = vector.broadcast %25 : vector<1x22xf32> to vector<16x22xf32>
    %27 = arith.addf %24, %26 : vector<16x22xf32>
    %28 = vector.extract_strided_slice %27 {offsets = [0, 0], sizes = [16, 11], strides = [1, 1]} : vector<16x22xf32> to vector<16x11xf32>
    %29 = vector.extract_strided_slice %27 {offsets = [0, 11], sizes = [16, 11], strides = [1, 1]} : vector<16x22xf32> to vector<16x11xf32>
    %cst_14 = arith.constant 5.000000e-01 : f32
    %30 = vector.broadcast %cst_14 : f32 to vector<16x11xf32>
    %31 = arith.mulf %30, %29 : vector<16x11xf32>
    %32 = math.exp %31 : vector<16x11xf32>
    %33 = arith.mulf %2, %32 : vector<16x11xf32>
    %34 = arith.addf %33, %28 : vector<16x11xf32>
    %35 = arith.truncf %34 : vector<16x11xf32> to vector<16x11xbf16>
    %c0_15 = arith.constant 0 : index
    %c0_16 = arith.constant 0 : index
    %36 = vector.load %arg7[%c0_15, %c0_16] : memref<11x50xbf16, #tpu.memory_space<vmem>>, vector<11x50xbf16>
    %cst_17 = arith.constant dense<0.000000e+00> : vector<16x50xf32>
    %37 = tpu.matmul %35, %36, %cst_17 {dimension_numbers = #tpu.dot_dimension_numbers<[1], [0], [0], [1], [0, 0, 1, 1], [], []>} : vector<16x11xbf16>, vector<11x50xbf16>, vector<16x50xf32> -> vector<16x50xf32>
    %c0_18 = arith.constant 0 : index
    %c0_19 = arith.constant 0 : index
    %38 = vector.load %arg8[%c0_18, %c0_19] : memref<1x50xf32, #tpu.memory_space<vmem>>, vector<1x50xf32>
    %39 = vector.broadcast %38 : vector<1x50xf32> to vector<16x50xf32>
    %40 = arith.addf %37, %39 : vector<16x50xf32>
    %cst_20 = arith.constant 0.000000e+00 : f32
    %41 = vector.broadcast %cst_20 : f32 to vector<16x50xf32>
    %42 = arith.maximumf %40, %41 : vector<16x50xf32>
    %43 = vector.broadcast %cst_20 : f32 to vector<16x50xf32>
    %44 = arith.subf %40, %43 : vector<16x50xf32>
    %45 = arith.cmpf one, %44, %44 : vector<16x50xf32>
    %46 = vector.broadcast %cst_20 : f32 to vector<16x50xf32>
    %47 = arith.addf %40, %46 : vector<16x50xf32>
    %48 = math.absf %44 : vector<16x50xf32>
    %cst_21 = arith.constant 0.000000e+00 : f32
    %49 = vector.broadcast %cst_21 : f32 to vector<16x50xf32>
    %50 = arith.subf %49, %48 : vector<16x50xf32>
    %51 = math.exp %50 : vector<16x50xf32>
    %52 = math.log1p %51 : vector<16x50xf32>
    %53 = arith.addf %42, %52 : vector<16x50xf32>
    %54 = arith.select %45, %47, %53 : vector<16x50xi1>, vector<16x50xf32>
    %55 = arith.truncf %54 : vector<16x50xf32> to vector<16x50xbf16>
    %c0_22 = arith.constant 0 : index
    %c0_23 = arith.constant 0 : index
    %56 = vector.load %arg9[%c0_22, %c0_23] : memref<50x102xbf16, #tpu.memory_space<vmem>>, vector<50x102xbf16>
    %cst_24 = arith.constant dense<0.000000e+00> : vector<16x102xf32>
    %57 = tpu.matmul %55, %56, %cst_24 {dimension_numbers = #tpu.dot_dimension_numbers<[1], [0], [0], [1], [0, 0, 1, 1], [], []>} : vector<16x50xbf16>, vector<50x102xbf16>, vector<16x102xf32> -> vector<16x102xf32>
    %c0_25 = arith.constant 0 : index
    %c0_26 = arith.constant 0 : index
    %58 = vector.load %arg10[%c0_25, %c0_26] : memref<1x102xf32, #tpu.memory_space<vmem>>, vector<1x102xf32>
    %59 = vector.broadcast %58 : vector<1x102xf32> to vector<16x102xf32>
    %60 = arith.addf %57, %59 : vector<16x102xf32>
    %cst_27 = arith.constant 5.000000e-01 : f32
    %61 = vector.broadcast %cst_27 : f32 to vector<16x102xf32>
    %62 = arith.mulf %61, %60 : vector<16x102xf32>
    %63 = math.tanh %62 : vector<16x102xf32>
    %cst_28 = arith.constant 5.000000e-01 : f32
    %64 = vector.broadcast %cst_28 : f32 to vector<16x102xf32>
    %65 = arith.mulf %64, %63 : vector<16x102xf32>
    %cst_29 = arith.constant 5.000000e-01 : f32
    %66 = vector.broadcast %cst_29 : f32 to vector<16x102xf32>
    %67 = arith.addf %65, %66 : vector<16x102xf32>
    %c0_30 = arith.constant 0 : index
    %c0_31 = arith.constant 0 : index
    %68 = vector.load %arg11[%c0_30, %c0_31] : memref<16x102xf32, #tpu.memory_space<vmem>>, vector<16x102xf32>
    tpu.vector_store %arg11[%c0_30, %c0_31], %67 {strides = array<i32>} : memref<16x102xf32, #tpu.memory_space<vmem>>, vector<16x102xf32>,
    %c0_32 = arith.constant 0 : index
    %c0_33 = arith.constant 0 : index
    %69 = vector.load %arg12[%c0_32, %c0_33] : memref<16x22xf32, #tpu.memory_space<vmem>>, vector<16x22xf32>
    tpu.vector_store %arg12[%c0_32, %c0_33], %27 {strides = array<i32>} : memref<16x22xf32, #tpu.memory_space<vmem>>, vector<16x22xf32>,
    %c0_34 = arith.constant 0 : index
    %c0_35 = arith.constant 0 : index
    %70 = vector.load %arg13[%c0_34, %c0_35] : memref<16x11xf32, #tpu.memory_space<vmem>>, vector<16x11xf32>
    tpu.vector_store %arg13[%c0_34, %c0_35], %34 {strides = array<i32>} : memref<16x11xf32, #tpu.memory_space<vmem>>, vector<16x11xf32>,
    return
  }
  func.func @transform_0(%arg0: i32) -> (i32, i32) {
    %c0_i32 = arith.constant 0 : i32
    %c0_i32_0 = arith.constant 0 : i32
    return %arg0, %c0_i32 : i32, i32
  }
  func.func @transform_1(%arg0: i32) -> (i32, i32) {
    %c0_i32 = arith.constant 0 : i32
    %c0_i32_0 = arith.constant 0 : i32
    return %arg0, %c0_i32 : i32, i32
  }
  func.func @transform_2(%arg0: i32) -> (i32, i32) {
    %c0_i32 = arith.constant 0 : i32
    %c0_i32_0 = arith.constant 0 : i32
    %c0_i32_1 = arith.constant 0 : i32
    return %c0_i32, %c0_i32_0 : i32, i32
  }
  func.func @transform_3(%arg0: i32) -> (i32, i32) {
    %c0_i32 = arith.constant 0 : i32
    %c0_i32_0 = arith.constant 0 : i32
    %c0_i32_1 = arith.constant 0 : i32
    return %c0_i32, %c0_i32_0 : i32, i32
  }
  func.func @transform_4(%arg0: i32) -> (i32, i32) {
    %c0_i32 = arith.constant 0 : i32
    %c0_i32_0 = arith.constant 0 : i32
    %c0_i32_1 = arith.constant 0 : i32
    return %c0_i32, %c0_i32_0 : i32, i32
  }
  func.func @transform_5(%arg0: i32) -> (i32, i32) {
    %c0_i32 = arith.constant 0 : i32
    %c0_i32_0 = arith.constant 0 : i32
    %c0_i32_1 = arith.constant 0 : i32
    return %c0_i32, %c0_i32_0 : i32, i32
  }
  func.func @transform_6(%arg0: i32) -> (i32, i32) {
    %c0_i32 = arith.constant 0 : i32
    %c0_i32_0 = arith.constant 0 : i32
    %c0_i32_1 = arith.constant 0 : i32
    return %c0_i32, %c0_i32_0 : i32, i32
  }
  func.func @transform_7(%arg0: i32) -> (i32, i32) {
    %c0_i32 = arith.constant 0 : i32
    %c0_i32_0 = arith.constant 0 : i32
    %c0_i32_1 = arith.constant 0 : i32
    return %c0_i32, %c0_i32_0 : i32, i32
  }
  func.func @transform_8(%arg0: i32) -> (i32, i32) {
    %c0_i32 = arith.constant 0 : i32
    %c0_i32_0 = arith.constant 0 : i32
    %c0_i32_1 = arith.constant 0 : i32
    return %c0_i32, %c0_i32_0 : i32, i32
  }
  func.func @transform_9(%arg0: i32) -> (i32, i32) {
    %c0_i32 = arith.constant 0 : i32
    %c0_i32_0 = arith.constant 0 : i32
    %c0_i32_1 = arith.constant 0 : i32
    return %c0_i32, %c0_i32_0 : i32, i32
  }
  func.func @transform_10(%arg0: i32) -> (i32, i32) {
    %c0_i32 = arith.constant 0 : i32
    %c0_i32_0 = arith.constant 0 : i32
    return %arg0, %c0_i32 : i32, i32
  }
  func.func @transform_11(%arg0: i32) -> (i32, i32) {
    %c0_i32 = arith.constant 0 : i32
    %c0_i32_0 = arith.constant 0 : i32
    return %arg0, %c0_i32 : i32, i32
  }
  func.func @transform_12(%arg0: i32) -> (i32, i32) {
    %c0_i32 = arith.constant 0 : i32
    %c0_i32_0 = arith.constant 0 : i32
    return %arg0, %c0_i32 : i32, i32
  }
}

</mosaic_0001>

<llo_original>
// kernel: vae_forward.1
$region0: #{vae_forward.1}
  #allocation0 [shape = 'u32[]', space=smem, size = 0x4, offset = 0x4, fixed_abs, tag = 'smem constant byte address 0x4 - core index']
  #allocation1 [shape = 'u32[144,128]{1,0:T(1,128)}', space=vmem, size = 0x12000, scoped, tag = 'internal scratch']
  %s0 = inlined_call_operand.vmem [shape: bf16[16,103], index: 0, kind: input, shape index: {}]
  %s1 = inlined_call_operand.vmem [shape: bf16[16,11], index: 1, kind: input, shape index: {}]
  %s2 = inlined_call_operand.vmem [shape: bf16[103,50], index: 2, kind: input, shape index: {}]
  %s3 = inlined_call_operand.vmem [shape: f32[1,50], index: 3, kind: input, shape index: {}]
  %s4 = inlined_call_operand.vmem [shape: bf16[50,22], index: 4, kind: input, shape index: {}]
  %s5 = inlined_call_operand.vmem [shape: f32[1,22], index: 5, kind: input, shape index: {}]
  %s6 = inlined_call_operand.vmem [shape: bf16[11,50], index: 6, kind: input, shape index: {}]
  %s7 = inlined_call_operand.vmem [shape: f32[1,50], index: 7, kind: input, shape index: {}]
  %s8 = inlined_call_operand.vmem [shape: bf16[50,102], index: 8, kind: input, shape index: {}]
  %s9 = inlined_call_operand.vmem [shape: f32[1,102], index: 9, kind: input, shape index: {}]
  %s10 = inlined_call_operand.vmem [shape: f32[16,102], index: 10, kind: output, shape index: {0}]
  %s11 = inlined_call_operand.vmem [shape: f32[16,22], index: 11, kind: output, shape index: {1}]
  %s12 = inlined_call_operand.vmem [shape: f32[16,11], index: 12, kind: output, shape index: {2}]
  %13 = xla_tuple %s10, %s11, %s12
  %s14 = sld [smem:[#allocation0]]
  $region66: #{vae_forward.1} parent=0
    _
  %s16 = ssub.s32 1, %s14
  %s17 = scalar_select 0, %s16, %s14
  // Predicated region
  $region2: #{vae_forward.1} parent=0 // pred_check
    _
  $region3: #{vae_forward.1} parent=0 // pred_check_branch
    %19 = sbr.rel (0) target = $region5
  $region4: #{vae_forward.1} parent=0 // pred_region
    _
  $region5: #{vae_forward.1} parent=0 // pred_fallthru
    _
  // Predicated region
  $region6: #{vae_forward.1} parent=0 // pred_check
    _
  $region7: #{vae_forward.1} parent=0 // pred_check_branch
    %21 = sbr.rel (0) target = $region9
  $region8: #{vae_forward.1} parent=0 // pred_region
    _
  $region9: #{vae_forward.1} parent=0 // pred_fallthru
    _
  // Predicated region
  $region10: #{vae_forward.1} parent=0 // pred_check
    _
  $region11: #{vae_forward.1} parent=0 // pred_check_branch
    %23 = sbr.rel (0) target = $region13
  $region12: #{vae_forward.1} parent=0 // pred_region
    _
  $region13: #{vae_forward.1} parent=0 // pred_fallthru
    _
  // Predicated region
  $region14: #{vae_forward.1} parent=0 // pred_check
    _
  $region15: #{vae_forward.1} parent=0 // pred_check_branch
    %25 = sbr.rel (0) target = $region17
  $region16: #{vae_forward.1} parent=0 // pred_region
    _
  $region17: #{vae_forward.1} parent=0 // pred_fallthru
    _
  // Predicated region
  $region18: #{vae_forward.1} parent=0 // pred_check
    _
  $region19: #{vae_forward.1} parent=0 // pred_check_branch
    %27 = sbr.rel (0) target = $region21
  $region20: #{vae_forward.1} parent=0 // pred_region
    _
  $region21: #{vae_forward.1} parent=0 // pred_fallthru
    _
  // Predicated region
  $region22: #{vae_forward.1} parent=0 // pred_check
    _
  $region23: #{vae_forward.1} parent=0 // pred_check_branch
    %29 = sbr.rel (0) target = $region25
  $region24: #{vae_forward.1} parent=0 // pred_region
    _
  $region25: #{vae_forward.1} parent=0 // pred_fallthru
    _
  // Predicated region
  $region26: #{vae_forward.1} parent=0 // pred_check
    _
  $region27: #{vae_forward.1} parent=0 // pred_check_branch
    %31 = sbr.rel (0) target = $region29
  $region28: #{vae_forward.1} parent=0 // pred_region
    _
  $region29: #{vae_forward.1} parent=0 // pred_fallthru
    _
  // Predicated region
  $region30: #{vae_forward.1} parent=0 // pred_check
    _
  $region31: #{vae_forward.1} parent=0 // pred_check_branch
    %33 = sbr.rel (0) target = $region33
  $region32: #{vae_forward.1} parent=0 // pred_region
    _
  $region33: #{vae_forward.1} parent=0 // pred_fallthru
    _
  // Predicated region
  $region34: #{vae_forward.1} parent=0 // pred_check
    _
  $region35: #{vae_forward.1} parent=0 // pred_check_branch
    %35 = sbr.rel (0) target = $region37
  $region36: #{vae_forward.1} parent=0 // pred_region
    _
  $region37: #{vae_forward.1} parent=0 // pred_fallthru
    _
  // Predicated region
  $region38: #{vae_forward.1} parent=0 // pred_check
    _
  $region39: #{vae_forward.1} parent=0 // pred_check_branch
    %37 = sbr.rel (0) target = $region41
  $region40: #{vae_forward.1} parent=0 // pred_region
    _
  $region41: #{vae_forward.1} parent=0 // pred_fallthru
    _
  %v39 = vld [vmem:[%s0] sm:$0xf]
  %v40 = vld [vmem:[%s0 + $0x4] sm:$0xf]
  %v41 = vld [vmem:[%s1] sm:$0xf]
  %v42 = vld [vmem:[%s1 + $0x4] sm:$0xf]
  %v43 = vunpack.c.l.bf16 %v41
  %v44 = vunpack.c.l.bf16 %v42
  %v45 = vld [vmem:[%s2] sm:$0xf]
  %v46 = vld [vmem:[%s2 + $0x4] sm:$0xf]
  %v47 = vld [vmem:[%s2 + $0x8] sm:$0xf]
  %v48 = vld [vmem:[%s2 + $0xc] sm:$0xf]
  %v49 = vld [vmem:[%s2 + $0x10] sm:$0xf]
  %v50 = vld [vmem:[%s2 + $0x14] sm:$0xf]
  %v51 = vld [vmem:[%s2 + $0x18] sm:$0xf]
  %v52 = vld [vmem:[%s2 + $0x1c] sm:$0xf]
  %v53 = vld [vmem:[%s2 + $0x20] sm:$0xf]
  %v54 = vld [vmem:[%s2 + $0x24] sm:$0xf]
  %v55 = vld [vmem:[%s2 + $0x28] sm:$0xf]
  %v56 = vld [vmem:[%s2 + $0x2c] sm:$0xf]
  %v57 = vld [vmem:[%s2 + $0x30] sm:$0xf]
  %v58 = vld [vmem:[%s3] sm:$0x1]
  %v60 = vlaneseq
  %v61 = vshrl.u32 %v60, 7
  %v62 = vsub.s32 0, %v61
  %v63 = vrot.slane %v58, %v62
  %v67 = vunpack.c.l.b16 %v39
  %v68 = vunpack.c.l.b16 %v40
  %v69 = vpack.c.b16 %v68, %v67
  %v83 = vunpack.c.l.b16 %v45
  %v84 = vunpack.c.l.b16 %v46
  %v85 = vunpack.c.l.b16 %v47
  %v86 = vunpack.c.l.b16 %v48
  %v87 = vunpack.c.l.b16 %v49
  %v88 = vunpack.c.l.b16 %v50
  %v89 = vunpack.c.l.b16 %v51
  %v90 = vunpack.c.l.b16 %v52
  %v91 = vunpack.c.l.b16 %v53
  %v92 = vunpack.c.l.b16 %v54
  %v93 = vunpack.c.l.b16 %v55
  %v94 = vunpack.c.l.b16 %v56
  %v95 = vunpack.c.l.b16 %v57
  %v96 = vpack.c.b16 %v84, %v83
  %v97 = vpack.c.b16 %v86, %v85
  %v98 = vpack.c.b16 %v88, %v87
  %v99 = vpack.c.b16 %v90, %v89
  %v100 = vpack.c.b16 %v92, %v91
  %v101 = vpack.c.b16 %v94, %v93
  %v102 = vpack.c.b16 %v95, %v95
  %vm109 = vcmask 842752
  %v111 = vsel %vm109, %v69, 0
  %vm113 = vcmask 1042432
  %vm114 = vcmask 1043456
  %v115 = vsel %vm113, 4294967295, 65535
  %v116 = vsel %vm114, %v115, 0
  %v118 = vand.u32 %v102, %v116
  %120 = vmatprep.subr.bf16.mxu0 0
  %121 = vmatpush1.bf16.msra.mxu0 0
  %122 = vmatprep.subr.bf16.mxu0 0
  %123 = vmatpush1.bf16.msra.mxu0 %v118
  %124 = vmatprep.subr.bf16.mxu0 0
  %125 = vmatpush1.bf16.msra.mxu0 %v101
  %126 = vmatprep.subr.bf16.mxu0 0
  %127 = vmatpush1.bf16.msra.mxu0 %v100
  %128 = vmatprep.subr.bf16.mxu0 0
  %129 = vmatpush1.bf16.msra.mxu0 %v99
  %130 = vmatprep.subr.bf16.mxu0 0
  %131 = vmatpush1.bf16.msra.mxu0 %v98
  %132 = vmatprep.subr.bf16.mxu0 0
  %133 = vmatpush1.bf16.msra.mxu0 %v97
  %134 = vmatprep.subr.bf16.mxu0 0
  %135 = vmatpush1.bf16.msra.mxu0 %v96
  %136 = vmatprep.subr.bf16.mxu0 0
  %137 = vmatpush2.bf16.msra.mxu0 0
  %138 = vmatprep.subr.bf16.mxu0 0
  %139 = vmatpush2.bf16.msra.mxu0 0
  %140 = vmatprep.subr.bf16.mxu0 0
  %141 = vmatpush2.bf16.msra.mxu0 0
  %142 = vmatprep.subr.bf16.mxu0 0
  %143 = vmatpush2.bf16.msra.mxu0 0
  %144 = vmatprep.subr.bf16.mxu0 0
  %145 = vmatpush2.bf16.msra.mxu0 0
  %146 = vmatprep.subr.bf16.mxu0 0
  %147 = vmatpush2.bf16.msra.mxu0 0
  %148 = vmatprep.subr.bf16.mxu0 0
  %149 = vmatpush2.bf16.msra.mxu0 0
  %150 = vmatprep.subr.bf16.mxu0 0
  %151 = vmatpush2.bf16.msra.mxu0 0
  %152 = vmatprep.mubr.bf16.mxu0 0
  %153 = vmatmul.mubr.bf16.gmra.mxu0 %v111
  %v154 = vpop.f32.mrf.mxu0
  %v155 = vadd.f32 %v63, %v154
  %v156 = vpop.f32.mrf.mxu0
  %v157 = vpop.f32.mrf.mxu0
  %v158 = vadd.f32 %v63, %v157
  %v159 = vpop.f32.mrf.mxu0
  %160 = vdwg.mxu0
  %v161 = vmax.f32 %v155, 0.0
  %v162 = vmax.f32 %v158, 0.0
  %vm163 = vcmp.ne.f32.partialorder %v155, %v155
  %vm164 = vcmp.ne.f32.partialorder %v158, %v158
  %v165 = vadd.f32 %v155, 0.0
  %v166 = vadd.f32 %v158, 0.0
  %v167 = vand.u32 2147483647, %v155
  %v168 = vand.u32 2147483647, %v158
  %v169 = vsub.f32 0.0, %v167
  %v170 = vsub.f32 0.0, %v168
  %v171 = vmul.f32 %v169, 1.442695
  %v172 = vpow.pop %v171
  %v173 = vmul.f32 %v170, 1.442695
  %v174 = vpow.pop %v173
  %v175 = vadd.f32 %v172, 1.0
  %v176 = vlog2.pop %v175
  %v177 = vmul.f32 %v176, 0.6931472
  %v178 = vmul.f32 -0.5, %v172
  %v179 = vadd.f32 %v178, 1.0
  %v180 = vmul.f32 %v179, %v172
  %v181 = vand.u32 2147483647, %v172
  %vm182 = vcmp.lt.f32.partialorder %v181, 0.0004427343
  %v183 = vsel %vm182, %v180, %v177
  %v184 = vadd.f32 %v174, 1.0
  %v185 = vlog2.pop %v184
  %v186 = vmul.f32 %v185, 0.6931472
  %v187 = vmul.f32 -0.5, %v174
  %v188 = vadd.f32 %v187, 1.0
  %v189 = vmul.f32 %v188, %v174
  %v190 = vand.u32 2147483647, %v174
  %vm191 = vcmp.lt.f32.partialorder %v190, 0.0004427343
  %v192 = vsel %vm191, %v189, %v186
  %v193 = vadd.f32 %v161, %v183
  %v194 = vadd.f32 %v162, %v192
  %v195 = vsel %vm163, %v165, %v193
  %v196 = vsel %vm164, %v166, %v194
  %v197 = vpack.c.bf16 %v196, %v195
  %v198 = vld [vmem:[%s4] sm:$0xf]
  %v199 = vld [vmem:[%s4 + $0x4] sm:$0xf]
  %v200 = vld [vmem:[%s4 + $0x8] sm:$0xf]
  %v201 = vld [vmem:[%s4 + $0xc] sm:$0xf]
  %v202 = vld [vmem:[%s4 + $0x10] sm:$0xf]
  %v203 = vld [vmem:[%s4 + $0x14] sm:$0xf]
  %v204 = vld [vmem:[%s4 + $0x18] sm:$0x1]
  %v205 = vld [vmem:[%s5] sm:$0x1]
  %v207 = vlaneseq
  %v208 = vshrl.u32 %v207, 7
  %v209 = vsub.s32 0, %v208
  %v210 = vrot.slane %v205, %v209
  %v219 = vunpack.c.l.b16 %v198
  %v220 = vunpack.c.l.b16 %v199
  %v221 = vunpack.c.l.b16 %v200
  %v222 = vunpack.c.l.b16 %v201
  %v223 = vunpack.c.l.b16 %v202
  %v224 = vunpack.c.l.b16 %v203
  %v225 = vunpack.c.l.b16 %v204
  %v226 = vpack.c.b16 %v220, %v219
  %v227 = vpack.c.b16 %v222, %v221
  %v228 = vpack.c.b16 %v224, %v223
  %v229 = vpack.c.b16 %v225, %v225
  %vm233 = vcmask 408576
  %v235 = vsel %vm233, %v197, 0
  %vm237 = vcmask 1040384
  %v239 = vsel %vm237, %v229, 0
  %241 = vmatprep.subr.bf16.mxu0 0
  %242 = vmatpush1.bf16.msra.mxu0 0
  %243 = vmatprep.subr.bf16.mxu0 0
  %244 = vmatpush1.bf16.msra.mxu0 0
  %245 = vmatprep.subr.bf16.mxu0 0
  %246 = vmatpush1.bf16.msra.mxu0 0
  %247 = vmatprep.subr.bf16.mxu0 0
  %248 = vmatpush1.bf16.msra.mxu0 0
  %249 = vmatprep.subr.bf16.mxu0 0
  %250 = vmatpush1.bf16.msra.mxu0 %v239
  %251 = vmatprep.subr.bf16.mxu0 0
  %252 = vmatpush1.bf16.msra.mxu0 %v228
  %253 = vmatprep.subr.bf16.mxu0 0
  %254 = vmatpush1.bf16.msra.mxu0 %v227
  %255 = vmatprep.subr.bf16.mxu0 0
  %256 = vmatpush1.bf16.msra.mxu0 %v226
  %257 = vmatprep.subr.bf16.mxu0 0
  %258 = vmatpush2.bf16.msra.mxu0 0
  %259 = vmatprep.subr.bf16.mxu0 0
  %260 = vmatpush2.bf16.msra.mxu0 0
  %261 = vmatprep.subr.bf16.mxu0 0
  %262 = vmatpush2.bf16.msra.mxu0 0
  %263 = vmatprep.subr.bf16.mxu0 0
  %264 = vmatpush2.bf16.msra.mxu0 0
  %265 = vmatprep.subr.bf16.mxu0 0
  %266 = vmatpush2.bf16.msra.mxu0 0
  %267 = vmatprep.subr.bf16.mxu0 0
  %268 = vmatpush2.bf16.msra.mxu0 0
  %269 = vmatprep.subr.bf16.mxu0 0
  %270 = vmatpush2.bf16.msra.mxu0 0
  %271 = vmatprep.subr.bf16.mxu0 0
  %272 = vmatpush2.bf16.msra.mxu0 0
  %273 = vmatprep.mubr.bf16.mxu0 0
  %274 = vmatmul.mubr.bf16.gmra.mxu0 %v235
  %v275 = vpop.f32.mrf.mxu0
  %v276 = vadd.f32 %v210, %v275
  %v277 = vpop.f32.mrf.mxu0
  %v278 = vpop.f32.mrf.mxu0
  %v279 = vadd.f32 %v210, %v278
  %v280 = vpop.f32.mrf.mxu0
  %281 = vdwg.mxu0
  %v282 = vmul.f32 %v276, 0.5
  %v283 = vmul.f32 %v279, 0.5
  %v284 = vmul.f32 %v282, 1.442695
  %v285 = vpow.pop %v284
  %v286 = vmul.f32 %v283, 1.442695
  %v287 = vpow.pop %v286
  %290 = vrot.lane.b32.xlu0 %v285, 117
  %v291 = vpop.permute.xlu0 %290
  %292 = vrot.lane.b32.xlu0 %v287, 117
  %v293 = vpop.permute.xlu0 %292
  %v296 = vmul.f32 %v43, %v291
  %v297 = vmul.f32 %v44, %v293
  %v298 = vadd.f32 %v296, %v276
  %v299 = vadd.f32 %v297, %v279
  %v300 = vpack.c.bf16 %v299, %v298
  %v301 = vld [vmem:[%s6] sm:$0xf]
  %v302 = vld [vmem:[%s6 + $0x4] sm:$0x3]
  %v303 = vld [vmem:[%s7] sm:$0x1]
  %v305 = vlaneseq
  %v306 = vshrl.u32 %v305, 7
  %v307 = vsub.s32 0, %v306
  %v308 = vrot.slane %v303, %v307
  %v312 = vunpack.c.l.b16 %v301
  %v313 = vunpack.c.l.b16 %v302
  %v314 = vpack.c.b16 %v313, %v312
  %vm315 = vcmask 89088
  %v317 = vsel %vm315, %v300, 0
  %vm319 = vcmask 1044480
  %vm320 = vcmask 1045504
  %v321 = vsel %vm319, 4294967295, 65535
  %v322 = vsel %vm320, %v321, 0
  %v324 = vand.u32 %v314, %v322
  %326 = vmatprep.subr.bf16.mxu0 0
  %327 = vmatpush1.bf16.msra.mxu0 0
  %328 = vmatprep.subr.bf16.mxu0 0
  %329 = vmatpush1.bf16.msra.mxu0 0
  %330 = vmatprep.subr.bf16.mxu0 0
  %331 = vmatpush1.bf16.msra.mxu0 0
  %332 = vmatprep.subr.bf16.mxu0 0
  %333 = vmatpush1.bf16.msra.mxu0 0
  %334 = vmatprep.subr.bf16.mxu0 0
  %335 = vmatpush1.bf16.msra.mxu0 0
  %336 = vmatprep.subr.bf16.mxu0 0
  %337 = vmatpush1.bf16.msra.mxu0 0
  %338 = vmatprep.subr.bf16.mxu0 0
  %339 = vmatpush1.bf16.msra.mxu0 0
  %340 = vmatprep.subr.bf16.mxu0 0
  %341 = vmatpush1.bf16.msra.mxu0 %v324
  %342 = vmatprep.subr.bf16.mxu0 0
  %343 = vmatpush2.bf16.msra.mxu0 0
  %344 = vmatprep.subr.bf16.mxu0 0
  %345 = vmatpush2.bf16.msra.mxu0 0
  %346 = vmatprep.subr.bf16.mxu0 0
  %347 = vmatpush2.bf16.msra.mxu0 0
  %348 = vmatprep.subr.bf16.mxu0 0
  %349 = vmatpush2.bf16.msra.mxu0 0
  %350 = vmatprep.subr.bf16.mxu0 0
  %351 = vmatpush2.bf16.msra.mxu0 0
  %352 = vmatprep.subr.bf16.mxu0 0
  %353 = vmatpush2.bf16.msra.mxu0 0
  %354 = vmatprep.subr.bf16.mxu0 0
  %355 = vmatpush2.bf16.msra.mxu0 0
  %356 = vmatprep.subr.bf16.mxu0 0
  %357 = vmatpush2.bf16.msra.mxu0 0
  %358 = vmatprep.mubr.bf16.mxu0 0
  %359 = vmatmul.mubr.bf16.gmra.mxu0 %v317
  %v360 = vpop.f32.mrf.mxu0
  %v361 = vadd.f32 %v308, %v360
  %v362 = vpop.f32.mrf.mxu0
  %v363 = vpop.f32.mrf.mxu0
  %v364 = vadd.f32 %v308, %v363
  %v365 = vpop.f32.mrf.mxu0
  %366 = vdwg.mxu0
  %v367 = vmax.f32 %v361, 0.0
  %v368 = vmax.f32 %v364, 0.0
  %vm369 = vcmp.ne.f32.partialorder %v361, %v361
  %vm370 = vcmp.ne.f32.partialorder %v364, %v364
  %v371 = vadd.f32 %v361, 0.0
  %v372 = vadd.f32 %v364, 0.0
  %v373 = vand.u32 2147483647, %v361
  %v374 = vand.u32 2147483647, %v364
  %v375 = vsub.f32 0.0, %v373
  %v376 = vsub.f32 0.0, %v374
  %v377 = vmul.f32 %v375, 1.442695
  %v378 = vpow.pop %v377
  %v379 = vmul.f32 %v376, 1.442695
  %v380 = vpow.pop %v379
  %v381 = vadd.f32 %v378, 1.0
  %v382 = vlog2.pop %v381
  %v383 = vmul.f32 %v382, 0.6931472
  %v384 = vmul.f32 -0.5, %v378
  %v385 = vadd.f32 %v384, 1.0
  %v386 = vmul.f32 %v385, %v378
  %v387 = vand.u32 2147483647, %v378
  %vm388 = vcmp.lt.f32.partialorder %v387, 0.0004427343
  %v389 = vsel %vm388, %v386, %v383
  %v390 = vadd.f32 %v380, 1.0
  %v391 = vlog2.pop %v390
  %v392 = vmul.f32 %v391, 0.6931472
  %v393 = vmul.f32 -0.5, %v380
  %v394 = vadd.f32 %v393, 1.0
  %v395 = vmul.f32 %v394, %v380
  %v396 = vand.u32 2147483647, %v380
  %vm397 = vcmp.lt.f32.partialorder %v396, 0.0004427343
  %v398 = vsel %vm397, %v395, %v392
  %v399 = vadd.f32 %v367, %v389
  %v400 = vadd.f32 %v368, %v398
  %v401 = vsel %vm369, %v371, %v399
  %v402 = vsel %vm370, %v372, %v400
  %v403 = vpack.c.bf16 %v402, %v401
  %v404 = vld [vmem:[%s8] sm:$0xf]
  %v405 = vld [vmem:[%s8 + $0x4] sm:$0xf]
  %v406 = vld [vmem:[%s8 + $0x8] sm:$0xf]
  %v407 = vld [vmem:[%s8 + $0xc] sm:$0xf]
  %v408 = vld [vmem:[%s8 + $0x10] sm:$0xf]
  %v409 = vld [vmem:[%s8 + $0x14] sm:$0xf]
  %v410 = vld [vmem:[%s8 + $0x18] sm:$0x1]
  %v411 = vld [vmem:[%s9] sm:$0x1]
  %v413 = vlaneseq
  %v414 = vshrl.u32 %v413, 7
  %v415 = vsub.s32 0, %v414
  %v416 = vrot.slane %v411, %v415
  %v425 = vunpack.c.l.b16 %v404
  %v426 = vunpack.c.l.b16 %v405
  %v427 = vunpack.c.l.b16 %v406
  %v428 = vunpack.c.l.b16 %v407
  %v429 = vunpack.c.l.b16 %v408
  %v430 = vunpack.c.l.b16 %v409
  %v431 = vunpack.c.l.b16 %v410
  %v432 = vpack.c.b16 %v426, %v425
  %v433 = vpack.c.b16 %v428, %v427
  %v434 = vpack.c.b16 %v430, %v429
  %v435 = vpack.c.b16 %v431, %v431
  %v440 = vsel %vm233, %v403, 0
  %v443 = vsel %vm237, %v435, 0
  %445 = vmatprep.subr.bf16.mxu0 0
  %446 = vmatpush1.bf16.msra.mxu0 0
  %447 = vmatprep.subr.bf16.mxu0 0
  %448 = vmatpush1.bf16.msra.mxu0 0
  %449 = vmatprep.subr.bf16.mxu0 0
  %450 = vmatpush1.bf16.msra.mxu0 0
  %451 = vmatprep.subr.bf16.mxu0 0
  %452 = vmatpush1.bf16.msra.mxu0 0
  %453 = vmatprep.subr.bf16.mxu0 0
  %454 = vmatpush1.bf16.msra.mxu0 %v443
  %455 = vmatprep.subr.bf16.mxu0 0
  %456 = vmatpush1.bf16.msra.mxu0 %v434
  %457 = vmatprep.subr.bf16.mxu0 0
  %458 = vmatpush1.bf16.msra.mxu0 %v433
  %459 = vmatprep.subr.bf16.mxu0 0
  %460 = vmatpush1.bf16.msra.mxu0 %v432
  %461 = vmatprep.subr.bf16.mxu0 0
  %462 = vmatpush2.bf16.msra.mxu0 0
  %463 = vmatprep.subr.bf16.mxu0 0
  %464 = vmatpush2.bf16.msra.mxu0 0
  %465 = vmatprep.subr.bf16.mxu0 0
  %466 = vmatpush2.bf16.msra.mxu0 0
  %467 = vmatprep.subr.bf16.mxu0 0
  %468 = vmatpush2.bf16.msra.mxu0 0
  %469 = vmatprep.subr.bf16.mxu0 0
  %470 = vmatpush2.bf16.msra.mxu0 0
  %471 = vmatprep.subr.bf16.mxu0 0
  %472 = vmatpush2.bf16.msra.mxu0 0
  %473 = vmatprep.subr.bf16.mxu0 0
  %474 = vmatpush2.bf16.msra.mxu0 0
  %475 = vmatprep.subr.bf16.mxu0 0
  %476 = vmatpush2.bf16.msra.mxu0 0
  %477 = vmatprep.mubr.bf16.mxu0 0
  %478 = vmatmul.mubr.bf16.gmra.mxu0 %v440
  %v479 = vpop.f32.mrf.mxu0
  %v480 = vadd.f32 %v416, %v479
  %v481 = vpop.f32.mrf.mxu0
  %v482 = vpop.f32.mrf.mxu0
  %v483 = vadd.f32 %v416, %v482
  %v484 = vpop.f32.mrf.mxu0
  %485 = vdwg.mxu0
  %v486 = vmul.f32 %v480, 0.5
  %v487 = vmul.f32 %v483, 0.5
  %v488 = vtanh.pop %v486
  %v489 = vtanh.pop %v487
  %v490 = vmul.f32 %v488, 0.5
  %v491 = vmul.f32 %v489, 0.5
  %v492 = vadd.f32 %v490, 0.5
  %v493 = vadd.f32 %v491, 0.5
  %vm494 = vcmask 834560
  %495 = vst.msk [vmem:[%s10] sm:$0xff] %vm494, %v492
  %496 = vst.msk [vmem:[%s10 + $0x8] sm:$0xff] %vm494, %v493
  %vm497 = vcmask 179200
  %498 = vst.msk [vmem:[%s11] sm:$0xff] %vm497, %v276
  %499 = vst.msk [vmem:[%s11 + $0x8] sm:$0xff] %vm497, %v279
  %500 = vst.msk [vmem:[%s12] sm:$0xff] %vm315, %v298
  %501 = vst.msk [vmem:[%s12 + $0x8] sm:$0xff] %vm315, %v299
  // Predicated region
  $region42: #{vae_forward.1} parent=0 // pred_check
    _
  $region43: #{vae_forward.1} parent=0 // pred_check_branch
    %503 = sbr.rel (0) target = $region45
  $region44: #{vae_forward.1} parent=0 // pred_region
    _
  $region45: #{vae_forward.1} parent=0 // pred_fallthru
    _
  // Predicated region
  $region46: #{vae_forward.1} parent=0 // pred_check
    _
  $region47: #{vae_forward.1} parent=0 // pred_check_branch
    %505 = sbr.rel (0) target = $region49
  $region48: #{vae_forward.1} parent=0 // pred_region
    _
  $region49: #{vae_forward.1} parent=0 // pred_fallthru
    _
  // Predicated region
  $region50: #{vae_forward.1} parent=0 // pred_check
    _
  $region51: #{vae_forward.1} parent=0 // pred_check_branch
    %507 = sbr.rel (0) target = $region53
  $region52: #{vae_forward.1} parent=0 // pred_region
    _
  $region53: #{vae_forward.1} parent=0 // pred_fallthru
    _
  // Predicated region
  $region54: #{vae_forward.1} parent=0 // pred_check
    _
  $region55: #{vae_forward.1} parent=0 // pred_check_branch
    %509 = sbr.rel (0) target = $region57
  $region56: #{vae_forward.1} parent=0 // pred_region
    _
  $region57: #{vae_forward.1} parent=0 // pred_fallthru
    _
  // Predicated region
  $region58: #{vae_forward.1} parent=0 // pred_check
    _
  $region59: #{vae_forward.1} parent=0 // pred_check_branch
    %511 = sbr.rel (0) target = $region61
  $region60: #{vae_forward.1} parent=0 // pred_region
    _
  $region61: #{vae_forward.1} parent=0 // pred_fallthru
    _
  // Predicated region
  $region62: #{vae_forward.1} parent=0 // pred_check
    _
  $region63: #{vae_forward.1} parent=0 // pred_check_branch
    %513 = sbr.rel (0) target = $region65
  $region64: #{vae_forward.1} parent=0 // pred_region
    _
  $region65: #{vae_forward.1} parent=0 // pred_fallthru
    _

</llo_original>
